<compile_context>
chip_gen: v7x
topology: tpu7x:2x2x1
jax: 0.10.0
libtpu: 0.0.40
codegen_flags: <defaults>
</compile_context>

<pallas_src>
import jax
import jax.numpy as jnp
from jax.experimental import pallas as pl
from jax.experimental.pallas import tpu as pltpu


def _round_up(x, m):
    return ((x + m - 1) // m) * m


def _contrast_kernel(work_ref, s_ref, ct_ref, num_ref, rowmeta_ref, colids_ref,
                     out_ref, denom_acc):
    """One (row-block, col-block) tile of the N x N similarity matrix.

    work_ref   : (grid_r*grid_c,) int32 SMEM  -- 1 if this tile can contribute
    s_ref      : (tm, D)  bf16   self rows, pre-scaled by 1/temperature
    ct_ref     : (D, tn)  bf16   cross^T column tile
    num_ref    : (tm, 1)  f32    per-row numerator logits (computed in wrapper)
    rowmeta_ref: (tm, 4)  int32  [audio_id, segment_id, speech_pad, row_valid]
    colids_ref : (2, tn)  int32  [audio_id ; segment_id] for the columns
    out_ref    : (8, 128) f32    per-row-block sum of log terms (broadcast)
    denom_acc  : (tm,128) f32    VMEM scratch: per-lane-group partial denominators
    """
    eps = 1e-05
    i = pl.program_id(0)
    j = pl.program_id(1)
    n_col = pl.num_programs(1)

    @pl.when(j == 0)
    def _():
        denom_acc[...] = jnp.zeros_like(denom_acc)

    @pl.when(work_ref[i * n_col + j] != 0)
    def _():
        meta = rowmeta_ref[...]                      # (tm, 4) int32
        aid_r = meta[:, 0:1]                         # (tm, 1)
        seg_r = meta[:, 1:2]
        cols = colids_ref[...]                       # (2, tn) int32
        aid_c = cols[0:1, :]                         # (1, tn)
        seg_c = cols[1:2, :]

        # bf16 x bf16 -> f32 accumulation on the MXU (1/T already folded in s).
        sim = jnp.dot(s_ref[...], ct_ref[...],
                      preferred_element_type=jnp.float32)        # (tm, tn) f32
        exp_sim = jnp.exp(sim)

        # same-audio minus same-segment, via where (no inf*0 NaN, fewer VPU ops)
        in_audio = aid_r == aid_c
        same_seg = seg_r == seg_c
        contrib = (jnp.where(in_audio, exp_sim, 0.0)
                   - jnp.where(same_seg, exp_sim, 0.0))

        # Deferred lane reduction: only VPU adds here; the XLU cross-lane
        # reduce happens once per row block in the finalize branch.
        tn = contrib.shape[1]
        part = contrib[:, 0:128]
        for g in range(1, tn // 128):
            part = part + contrib[:, g * 128:(g + 1) * 128]
        denom_acc[...] += part

    @pl.when(j == n_col - 1)
    def _():
        meta = rowmeta_ref[...]
        pad_r = meta[:, 2:3]                         # speech padding mask
        valid_r = meta[:, 3:4]                       # 0 for grid-padding rows
        num = num_ref[...]                           # (tm, 1) f32
        denom = jnp.sum(denom_acc[...], axis=-1, keepdims=True)   # (tm, 1)
        denom = jnp.where(denom <= eps, 0.0, denom)
        denom = jnp.where(pad_r != 0, 0.0, denom)
        # log(exp(num)/(exp(num)+denom+eps)) == num - log(exp(num)+denom+eps)
        log_term = num - jnp.log(jnp.exp(num) + denom + eps)
        log_term = jnp.where(valid_r != 0, log_term, 0.0)
        block_sum = jnp.sum(log_term, axis=0, keepdims=True)      # (1, 1)
        out_ref[...] = jnp.broadcast_to(block_sum, out_ref.shape)


def contrast_across_segments(self_attd_chunk, cross_attd_chunk, Q_emb,
                             audio_ID, speech_padding_mask, temperature=1.0,
                             *, block_m=256, block_n=1024,
                             vmem_limit_bytes=48 * 1024 * 1024):
    """Matches contrastAcrossSegments.forward; returns (-log_exp, sim_loss)."""
    del Q_emb  # unused by the reference module's forward
    B, max_chunk, D = self_attd_chunk.shape
    N = B * max_chunk
    inv_t = 1.0 / float(temperature)

    s = self_attd_chunk.reshape(N, D).astype(jnp.float32)
    c = cross_attd_chunk.reshape(N, D).astype(jnp.float32)

    # O(N*D) terms are done once here, in full f32 (kernel keeps the O(N^2) part)
    num = jnp.sum(s * c, axis=-1, keepdims=True) * inv_t          # (N, 1)
    sim_loss = jnp.mean(1.0 - num)

    aid = audio_ID.reshape(N).astype(jnp.int32)
    aid = aid - jnp.min(aid)                      # >= 0 so sentinels never match
    seg = jnp.arange(N, dtype=jnp.int32) // max_chunk
    pad = speech_padding_mask.reshape(N).astype(jnp.int32)

    # ---- tile sizes ---------------------------------------------------------
    block_m = _round_up(max(block_m, 8), 8)
    block_n = _round_up(max(block_n, 128), 128)
    tm = min(block_m, _round_up(N, 8))
    # v7x megacore: prefer >= 2 row blocks so both TensorCores get work.
    if tm > 128 and _round_up(N, tm) // tm < 2:
        tm = max(128, _round_up((N + 1) // 2, 8))
    tn = min(block_n, _round_up(N, 128))
    np_r = _round_up(N, tm)
    np_c = _round_up(N, tn)
    grid_r = np_r // tm
    grid_c = np_c // tn

    def _pad1(x, total, fill):
        return jnp.pad(x, (0, total - x.shape[0]), constant_values=fill)

    # bf16 MXU operands; 1/T folded into self rows once (O(N*D), not per tile).
    s_bf = jnp.pad(s * inv_t, ((0, np_r - N), (0, 0))).astype(jnp.bfloat16)
    ct_bf = jnp.pad(c.T, ((0, 0), (0, np_c - N))).astype(jnp.bfloat16)
    num_p = jnp.pad(num, ((0, np_r - N), (0, 0)))

    # packed row metadata (row sentinel -1) and column IDs (col sentinel -2)
    aid_rp = _pad1(aid, np_r, -1)
    seg_rp = _pad1(seg, np_r, -1)
    pad_rp = _pad1(pad, np_r, 1)
    valid_rp = _pad1(jnp.ones((N,), jnp.int32), np_r, 0)
    row_meta = jnp.stack([aid_rp, seg_rp, pad_rp, valid_rp], axis=1)  # (np_r, 4)

    aid_cp = _pad1(aid, np_c, -2)
    seg_cp = _pad1(seg, np_c, -2)
    col_ids = jnp.stack([aid_cp, seg_cp], axis=0)                     # (2, np_c)

    # Conservative block-work mask: per-block [min,max] interval overlap of
    # audio IDs or segment IDs (false positives allowed, never false negatives).
    def _rng(v, nb, bs):
        vr = v.reshape(nb, bs)
        return vr.min(axis=1), vr.max(axis=1)

    ra_lo, ra_hi = _rng(aid_rp, grid_r, tm)
    rs_lo, rs_hi = _rng(seg_rp, grid_r, tm)
    ca_lo, ca_hi = _rng(aid_cp, grid_c, tn)
    cs_lo, cs_hi = _rng(seg_cp, grid_c, tn)
    aud_ov = (ra_lo[:, None] <= ca_hi[None, :]) & (ca_lo[None, :] <= ra_hi[:, None])
    seg_ov = (rs_lo[:, None] <= cs_hi[None, :]) & (cs_lo[None, :] <= rs_hi[:, None])
    work = (aud_ov | seg_ov).astype(jnp.int32).reshape(-1)            # (gr*gc,)

    grid_spec = pltpu.PrefetchScalarGridSpec(
        num_scalar_prefetch=1,
        grid=(grid_r, grid_c),
        in_specs=[
            pl.BlockSpec((tm, D), lambda i, j, w: (i, 0)),   # self rows (bf16)
            pl.BlockSpec((D, tn), lambda i, j, w: (0, j)),   # cross^T cols (bf16)
            pl.BlockSpec((tm, 1), lambda i, j, w: (i, 0)),   # numerator logits
            pl.BlockSpec((tm, 4), lambda i, j, w: (i, 0)),   # row metadata
            pl.BlockSpec((2, tn), lambda i, j, w: (0, j)),   # column ids
        ],
        out_specs=pl.BlockSpec((8, 128), lambda i, j, w: (i, 0)),
        scratch_shapes=[pltpu.VMEM((tm, 128), jnp.float32)],
    )

    out = pl.pallas_call(
        _contrast_kernel,
        grid_spec=grid_spec,
        out_shape=jax.ShapeDtypeStruct((grid_r * 8, 128), jnp.float32),
        compiler_params=pltpu.CompilerParams(
            dimension_semantics=("parallel", "arbitrary"),
            vmem_limit_bytes=vmem_limit_bytes,   # 48 MiB: safe on v7x; raise on v5e/v6e
        ),
    )(work, s_bf, ct_bf, num_p, row_meta, col_ids)

    block_sums = out.reshape(grid_r, 8, 128)[:, 0, 0]   # one scalar per row block
    # mean over chunks then batch == global mean over the N real rows
    neg_log_exp = -jnp.sum(block_sums) / N
    return neg_log_exp, sim_loss


def _reference(self_attd_chunk, cross_attd_chunk, audio_ID,
               speech_padding_mask, temperature=1.0):
    """Pure-JAX port of the PyTorch forward for validation."""
    eps = 1e-05
    B, M, D = self_attd_chunk.shape
    su = self_attd_chunk.reshape(B * M, D)
    cu = cross_attd_chunk.reshape(B * M, D)
    sim = jnp.exp(jnp.einsum('bid,bjd->bij', self_attd_chunk,
                             cross_attd_chunk) / temperature)
    sim_segment = sim.sum(-1)
    sim_all = su @ cu.T / temperature
    in_audio = audio_ID[None, :] == audio_ID[:, None]
    sim_same = jnp.where(in_audio, jnp.exp(sim_all), 0.0)
    denom = sim_same.sum(-1).reshape(B, M) - sim_segment
    denom = jnp.where(denom <= eps, 0.0, denom)
    denom = jnp.where(speech_padding_mask, 0.0, denom)
    num = jnp.sum(self_attd_chunk * cross_attd_chunk, -1) / temperature
    numerator = jnp.exp(num)
    log_exp = jnp.mean(jnp.log(numerator / (numerator + denom + eps)))
    sim_loss = jnp.mean(1.0 - num)
    return -log_exp, sim_loss


def _run_case(key, B, max_chunk, D, audio_ID, n_pad_chunks, temperature=1.0, **kw):
    k1, k2, k3 = jax.random.split(key, 3)
    self_attd_chunk = 0.1 * jax.random.normal(k1, (B, max_chunk, D), jnp.float32)
    cross_attd_chunk = 0.1 * jax.random.normal(k2, (B, max_chunk, D), jnp.float32)
    Q_emb = jax.random.normal(k3, (B, D), jnp.float32)   # unused by forward
    speech_padding_mask = (jnp.zeros((B, max_chunk), dtype=bool)
                           .at[:, -n_pad_chunks:].set(True))

    out = contrast_across_segments(self_attd_chunk, cross_attd_chunk, Q_emb,
                                   audio_ID, speech_padding_mask,
                                   temperature=temperature, **kw)
    out = jax.block_until_ready(out)
    ref = _reference(self_attd_chunk, cross_attd_chunk, audio_ID,
                     speech_padding_mask, temperature)
    for got, want, name in zip(out, ref, ("neg_log_exp", "sim_loss")):
        # bf16 MXU operands + tiled f32 reduction order vs. XLA's f32 matmul.
        assert jnp.allclose(got, want, rtol=3e-3, atol=2e-3), (name, got, want)


if __name__ == "__main__":
    key = jax.random.PRNGKey(0)
    k_a, k_b, k_c = jax.random.split(key, 3)

    # Case 1: tiny smoke test (single-tile grid). Audio groups chosen so both
    # the positive-denominator and thresholded-to-zero branches are exercised.
    B1, M1 = 2, 8
    audio_ID_1 = jnp.concatenate([jnp.zeros(12, jnp.int32),
                                  jnp.arange(12, 16, dtype=jnp.int32)])
    _run_case(k_a, B1, M1, 32, audio_ID_1, n_pad_chunks=2)

    # Case 2: multi-block grid (3 row x 2 col blocks) checking the resident
    # per-row-block accumulator, column padding and the parallel row axis.
    B2, M2 = 2, 96
    N2 = B2 * M2
    audio_ID_2 = jnp.concatenate([jnp.zeros(N2 - 12, jnp.int32),
                                  jnp.arange(1, 13, dtype=jnp.int32)])
    _run_case(k_b, B2, M2, 32, audio_ID_2, n_pad_chunks=3,
              block_m=64, block_n=128)

    # Case 3: disjoint audio groups + exact column tiling so some (row, col)
    # tiles are provably zero-weight -> exercises the scalar-prefetch skip path
    # (and a non-unit temperature exercises the folded 1/T scaling).
    B3, M3 = 2, 128
    N3 = B3 * M3
    audio_ID_3 = jnp.arange(N3, dtype=jnp.int32) // 64
    _run_case(k_c, B3, M3, 32, audio_ID_3, n_pad_chunks=4, temperature=0.5,
              block_m=64, block_n=128)

    print("KERNEL_OK")
</pallas_src>

<mosaic_0001>
module attributes {stable_mosaic.version = 11 : i64} {
  func.func @_contrast_kernel(%arg0: i32, %arg1: i32, %arg2: memref<1xi32, #tpu.memory_space<smem>>, %arg3: memref<16x32xbf16, #tpu.memory_space<vmem>>, %arg4: memref<32x128xbf16, #tpu.memory_space<vmem>>, %arg5: memref<16x1xf32, #tpu.memory_space<vmem>>, %arg6: memref<16x4xi32, #tpu.memory_space<vmem>>, %arg7: memref<2x128xi32, #tpu.memory_space<vmem>>, %arg8: memref<8x128xf32, #tpu.memory_space<vmem>>, %arg9: memref<16x128xf32, #tpu.memory_space<vmem>>) attributes {dimension_semantics = [#tpu.dimension_semantics<parallel>, #tpu.dimension_semantics<arbitrary>], iteration_bounds = array<i64: 1, 1>, scalar_prefetch = 1 : i64, scratch_operands = 1 : i64, tpu.core_type = #tpu.core_type<tc>, window_params = [{transform_indices = @transform_0, window_bounds = array<i64: 16, 32>}, {transform_indices = @transform_1, window_bounds = array<i64: 32, 128>}, {transform_indices = @transform_2, window_bounds = array<i64: 16, 1>}, {transform_indices = @transform_3, window_bounds = array<i64: 16, 4>}, {transform_indices = @transform_4, window_bounds = array<i64: 2, 128>}, {transform_indices = @transform_5, window_bounds = array<i64: 8, 128>}]} {
    %c0_i32 = arith.constant 0 : i32
    %0 = arith.cmpi eq, %arg1, %c0_i32 : i32
    %1 = arith.extui %0 : i1 to i32
    %c0_i32_0 = arith.constant 0 : i32
    %2 = arith.cmpi ne, %1, %c0_i32_0 : i32
    scf.if %2 {
      %cst = arith.constant 0.000000e+00 : f32
      %13 = vector.broadcast %cst : f32 to vector<16x128xf32>
      %c0 = arith.constant 0 : index
      %c0_5 = arith.constant 0 : index
      %14 = vector.load %arg9[%c0, %c0_5] : memref<16x128xf32, #tpu.memory_space<vmem>>, vector<16x128xf32>
      tpu.vector_store %arg9[%c0, %c0_5], %13 {strides = array<i32>} : memref<16x128xf32, #tpu.memory_space<vmem>>, vector<16x128xf32>,
    } else {
    }
    %c1_i32 = arith.constant 1 : i32
    %3 = arith.muli %arg0, %c1_i32 : i32
    %4 = arith.addi %3, %arg1 : i32
    %5 = arith.index_cast %4 : i32 to index
    %6 = memref.load %arg2[%5] : memref<1xi32, #tpu.memory_space<smem>>
    %c0_i32_1 = arith.constant 0 : i32
    %7 = arith.cmpi ne, %6, %c0_i32_1 : i32
    %8 = arith.extui %7 : i1 to i32
    %c0_i32_2 = arith.constant 0 : i32
    %9 = arith.cmpi ne, %8, %c0_i32_2 : i32
    scf.if %9 {
      %c0 = arith.constant 0 : index
      %c0_5 = arith.constant 0 : index
      %13 = vector.load %arg6[%c0, %c0_5] : memref<16x4xi32, #tpu.memory_space<vmem>>, vector<16x4xi32>
      %14 = vector.extract_strided_slice %13 {offsets = [0, 0], sizes = [16, 1], strides = [1, 1]} : vector<16x4xi32> to vector<16x1xi32>
      %15 = vector.extract_strided_slice %13 {offsets = [0, 1], sizes = [16, 1], strides = [1, 1]} : vector<16x4xi32> to vector<16x1xi32>
      %c0_6 = arith.constant 0 : index
      %c0_7 = arith.constant 0 : index
      %16 = vector.load %arg7[%c0_6, %c0_7] : memref<2x128xi32, #tpu.memory_space<vmem>>, vector<2x128xi32>
      %17 = vector.extract_strided_slice %16 {offsets = [0, 0], sizes = [1, 128], strides = [1, 1]} : vector<2x128xi32> to vector<1x128xi32>
      %18 = vector.extract_strided_slice %16 {offsets = [1, 0], sizes = [1, 128], strides = [1, 1]} : vector<2x128xi32> to vector<1x128xi32>
      %c0_8 = arith.constant 0 : index
      %c0_9 = arith.constant 0 : index
      %19 = vector.load %arg3[%c0_8, %c0_9] : memref<16x32xbf16, #tpu.memory_space<vmem>>, vector<16x32xbf16>
      %c0_10 = arith.constant 0 : index
      %c0_11 = arith.constant 0 : index
      %20 = vector.load %arg4[%c0_10, %c0_11] : memref<32x128xbf16, #tpu.memory_space<vmem>>, vector<32x128xbf16>
      %cst = arith.constant dense<0.000000e+00> : vector<16x128xf32>
      %21 = tpu.matmul %19, %20, %cst {dimension_numbers = #tpu.dot_dimension_numbers<[1], [0], [0], [1], [0, 0, 1, 1], [], []>} : vector<16x32xbf16>, vector<32x128xbf16>, vector<16x128xf32> -> vector<16x128xf32>
      %22 = math.exp %21 : vector<16x128xf32>
      %23 = vector.broadcast %14 : vector<16x1xi32> to vector<16x128xi32>
      %24 = vector.broadcast %17 : vector<1x128xi32> to vector<16x128xi32>
      %25 = arith.cmpi eq, %23, %24 : vector<16x128xi32>
      %26 = vector.broadcast %15 : vector<16x1xi32> to vector<16x128xi32>
      %27 = vector.broadcast %18 : vector<1x128xi32> to vector<16x128xi32>
      %28 = arith.cmpi eq, %26, %27 : vector<16x128xi32>
      %cst_12 = arith.constant 0.000000e+00 : f32
      %29 = vector.broadcast %cst_12 : f32 to vector<16x128xf32>
      %30 = arith.select %25, %22, %29 : vector<16x128xi1>, vector<16x128xf32>
      %cst_13 = arith.constant 0.000000e+00 : f32
      %31 = vector.broadcast %cst_13 : f32 to vector<16x128xf32>
      %32 = arith.select %28, %22, %31 : vector<16x128xi1>, vector<16x128xf32>
      %33 = arith.subf %30, %32 : vector<16x128xf32>
      %c0_14 = arith.constant 0 : index
      %c0_15 = arith.constant 0 : index
      %34 = vector.load %arg9[%c0_14, %c0_15] : memref<16x128xf32, #tpu.memory_space<vmem>>, vector<16x128xf32>
      %35 = arith.addf %34, %33 : vector<16x128xf32>
      %c0_16 = arith.constant 0 : index
      %c0_17 = arith.constant 0 : index
      %36 = vector.load %arg9[%c0_16, %c0_17] : memref<16x128xf32, #tpu.memory_space<vmem>>, vector<16x128xf32>
      tpu.vector_store %arg9[%c0_16, %c0_17], %35 {strides = array<i32>} : memref<16x128xf32, #tpu.memory_space<vmem>>, vector<16x128xf32>,
    } else {
    }
    %c0_i32_3 = arith.constant 0 : i32
    %10 = arith.cmpi eq, %arg1, %c0_i32_3 : i32
    %11 = arith.extui %10 : i1 to i32
    %c0_i32_4 = arith.constant 0 : i32
    %12 = arith.cmpi ne, %11, %c0_i32_4 : i32
    scf.if %12 {
      %c0 = arith.constant 0 : index
      %c0_5 = arith.constant 0 : index
      %13 = vector.load %arg6[%c0, %c0_5] : memref<16x4xi32, #tpu.memory_space<vmem>>, vector<16x4xi32>
      %14 = vector.extract_strided_slice %13 {offsets = [0, 2], sizes = [16, 1], strides = [1, 1]} : vector<16x4xi32> to vector<16x1xi32>
      %15 = vector.extract_strided_slice %13 {offsets = [0, 3], sizes = [16, 1], strides = [1, 1]} : vector<16x4xi32> to vector<16x1xi32>
      %c0_6 = arith.constant 0 : index
      %c0_7 = arith.constant 0 : index
      %16 = vector.load %arg5[%c0_6, %c0_7] : memref<16x1xf32, #tpu.memory_space<vmem>>, vector<16x1xf32>
      %c0_8 = arith.constant 0 : index
      %c0_9 = arith.constant 0 : index
      %17 = vector.load %arg9[%c0_8, %c0_9] : memref<16x128xf32, #tpu.memory_space<vmem>>, vector<16x128xf32>
      %cst = arith.constant dense<0.000000e+00> : vector<16xf32>
      %18 = vector.multi_reduction <add>, %17, %cst [1] : vector<16x128xf32> to vector<16xf32>
      %19 = vector.shape_cast %18 : vector<16xf32> to vector<16x1xf32>
      %cst_10 = arith.constant 9.99999974E-6 : f32
      %20 = vector.broadcast %cst_10 : f32 to vector<16x1xf32>
      %21 = arith.cmpf ole, %19, %20 : vector<16x1xf32>
      %cst_11 = arith.constant 0.000000e+00 : f32
      %22 = vector.broadcast %cst_11 : f32 to vector<16x1xf32>
      %23 = arith.select %21, %22, %19 : vector<16x1xi1>, vector<16x1xf32>
      %c0_i32_12 = arith.constant 0 : i32
      %24 = vector.broadcast %c0_i32_12 : i32 to vector<16x1xi32>
      %25 = arith.cmpi ne, %14, %24 : vector<16x1xi32>
      %cst_13 = arith.constant 0.000000e+00 : f32
      %26 = vector.broadcast %cst_13 : f32 to vector<16x1xf32>
      %27 = arith.select %25, %26, %23 : vector<16x1xi1>, vector<16x1xf32>
      %28 = math.exp %16 : vector<16x1xf32>
      %29 = arith.addf %28, %27 : vector<16x1xf32>
      %cst_14 = arith.constant 9.99999974E-6 : f32
      %30 = vector.broadcast %cst_14 : f32 to vector<16x1xf32>
      %31 = arith.addf %29, %30 : vector<16x1xf32>
      %32 = math.log %31 : vector<16x1xf32>
      %33 = arith.subf %16, %32 : vector<16x1xf32>
      %c0_i32_15 = arith.constant 0 : i32
      %34 = vector.broadcast %c0_i32_15 : i32 to vector<16x1xi32>
      %35 = arith.cmpi ne, %15, %34 : vector<16x1xi32>
      %cst_16 = arith.constant 0.000000e+00 : f32
      %36 = vector.broadcast %cst_16 : f32 to vector<16x1xf32>
      %37 = arith.select %35, %33, %36 : vector<16x1xi1>, vector<16x1xf32>
      %cst_17 = arith.constant dense<0.000000e+00> : vector<1xf32>
      %38 = vector.multi_reduction <add>, %37, %cst_17 [0] : vector<16x1xf32> to vector<1xf32>
      %39 = vector.shape_cast %38 : vector<1xf32> to vector<1x1xf32>
      %40 = vector.shape_cast %39 : vector<1x1xf32> to vector<1x1xf32>
      %41 = vector.broadcast %40 : vector<1x1xf32> to vector<8x128xf32>
      %c0_18 = arith.constant 0 : index
      %c0_19 = arith.constant 0 : index
      %42 = vector.load %arg8[%c0_18, %c0_19] : memref<8x128xf32, #tpu.memory_space<vmem>>, vector<8x128xf32>
      tpu.vector_store %arg8[%c0_18, %c0_19], %41 {strides = array<i32>} : memref<8x128xf32, #tpu.memory_space<vmem>>, vector<8x128xf32>,
    } else {
    }
    return
  }
  func.func @transform_0(%arg0: i32, %arg1: i32, %arg2: memref<1xi32, #tpu.memory_space<smem>>) -> (i32, i32) {
    %c0_i32 = arith.constant 0 : i32
    %c0_i32_0 = arith.constant 0 : i32
    return %arg0, %c0_i32 : i32, i32
  }
  func.func @transform_1(%arg0: i32, %arg1: i32, %arg2: memref<1xi32, #tpu.memory_space<smem>>) -> (i32, i32) {
    %c0_i32 = arith.constant 0 : i32
    %c0_i32_0 = arith.constant 0 : i32
    return %c0_i32, %arg1 : i32, i32
  }
  func.func @transform_2(%arg0: i32, %arg1: i32, %arg2: memref<1xi32, #tpu.memory_space<smem>>) -> (i32, i32) {
    %c0_i32 = arith.constant 0 : i32
    %c0_i32_0 = arith.constant 0 : i32
    return %arg0, %c0_i32 : i32, i32
  }
  func.func @transform_3(%arg0: i32, %arg1: i32, %arg2: memref<1xi32, #tpu.memory_space<smem>>) -> (i32, i32) {
    %c0_i32 = arith.constant 0 : i32
    %c0_i32_0 = arith.constant 0 : i32
    return %arg0, %c0_i32 : i32, i32
  }
  func.func @transform_4(%arg0: i32, %arg1: i32, %arg2: memref<1xi32, #tpu.memory_space<smem>>) -> (i32, i32) {
    %c0_i32 = arith.constant 0 : i32
    %c0_i32_0 = arith.constant 0 : i32
    return %c0_i32, %arg1 : i32, i32
  }
  func.func @transform_5(%arg0: i32, %arg1: i32, %arg2: memref<1xi32, #tpu.memory_space<smem>>) -> (i32, i32) {
    %c0_i32 = arith.constant 0 : i32
    %c0_i32_0 = arith.constant 0 : i32
    return %arg0, %c0_i32 : i32, i32
  }
}

</mosaic_0001>

<llo_original>
// kernel: tpu_custom_call.1
$region0: #{tpu_custom_call.1}
  #allocation0 [shape = 'u32[]', space=smem, size = 0x4, offset = 0x4, fixed_abs, tag = 'smem constant byte address 0x4 - core index']
  #allocation1 [shape = 'u32[144,128]{1,0:T(1,128)}', space=vmem, size = 0x12000, scoped, tag = 'internal scratch']
  #allocation2 [shape = 'f32[16,128]{1,0:T(8,128)}', space=vmem, size = 0x2000, scoped, tag = 'scratch operand']
  #allocation3 [shape = 's32[1]{0}', space=sflag, size = 0x4, scoped, tag = 'scoped memory for tpu_custom_call.1']
  #allocation4 [shape = 's32[1]{0:T(128)S(6)}', space=smem, size = 0x200, scoped, tag = 'prefetched SMEM operand 0']
  %s0 = inlined_call_operand.<no memory space> [shape: s32[1], index: 0, kind: input, shape index: {}]
  %s1 = inlined_call_operand.vmem [shape: bf16[16,32], index: 1, kind: input, shape index: {}]
  %s2 = inlined_call_operand.vmem [shape: bf16[32,128], index: 2, kind: input, shape index: {}]
  %s3 = inlined_call_operand.vmem [shape: f32[16,1], index: 3, kind: input, shape index: {}]
  %s4 = inlined_call_operand.vmem [shape: s32[16,4], index: 4, kind: input, shape index: {}]
  %s5 = inlined_call_operand.vmem [shape: s32[2,128], index: 5, kind: input, shape index: {}]
  %s6 = inlined_call_operand.hbm [shape: f32[8,128], index: 6, kind: output, shape index: {}]
  %s7 = sld [smem:[#allocation0]]
  $region42: #{tpu_custom_call.1} parent=0
    _
  %s9 = ssub.s32 1, %s7
  %s10 = scalar_select 0, %s9, %s7
  %11 = sst [smem:[#allocation4]] %s0
  $region1: #{tpu_custom_call.1} parent=0
    #allocation5 [shape = 'u8[4096]{0}', space=vmem, size = 0x1000, scoped, tag = 'output window, operand 0, single buffered']
    #allocation6 [shape = 's32[1]{0}', space=sflag, size = 0x4, scoped, tag = 'scoped memory for tpu_custom_call.1']
    %12 = vsyncpa [#allocation6], 0
    // Predicated region
    $region2: #{tpu_custom_call.1} parent=1 // pred_check
      _
    $region3: #{tpu_custom_call.1} parent=1 // pred_check_branch
      %14 = sbr.rel (0) target = $region5
    $region4: #{tpu_custom_call.1} parent=1 // pred_region
      _
    $region5: #{tpu_custom_call.1} parent=1 // pred_fallthru
      _
    // Predicated region
    $region6: #{tpu_custom_call.1} parent=1 // pred_check
      _
    $region7: #{tpu_custom_call.1} parent=1 // pred_check_branch
      %16 = sbr.rel (0) target = $region9
    $region8: #{tpu_custom_call.1} parent=1 // pred_region
      _
    $region9: #{tpu_custom_call.1} parent=1 // pred_fallthru
      _
    // Predicated region
    $region10: #{tpu_custom_call.1} parent=1 // pred_check
      _
    $region11: #{tpu_custom_call.1} parent=1 // pred_check_branch
      %18 = sbr.rel (0) target = $region13
    $region12: #{tpu_custom_call.1} parent=1 // pred_region
      _
    $region13: #{tpu_custom_call.1} parent=1 // pred_fallthru
      _
    // Predicated region
    $region14: #{tpu_custom_call.1} parent=1 // pred_check
      _
    $region15: #{tpu_custom_call.1} parent=1 // pred_check_branch
      %20 = sbr.rel (0) target = $region17
    $region16: #{tpu_custom_call.1} parent=1 // pred_region
      _
    $region17: #{tpu_custom_call.1} parent=1 // pred_fallthru
      _
    // Predicated region
    $region18: #{tpu_custom_call.1} parent=1 // pred_check
      _
    $region19: #{tpu_custom_call.1} parent=1 // pred_check_branch
      %22 = sbr.rel (0) target = $region21
    $region20: #{tpu_custom_call.1} parent=1 // pred_region
      _
    $region21: #{tpu_custom_call.1} parent=1 // pred_fallthru
      _
    %p24 = scmp.eq.s32.totalorder 0, 0
    // Predicated region
    $region22: #{tpu_custom_call.1} parent=1 // pred_check
      %p25 = pneg %p24
    $region23: #{tpu_custom_call.1} parent=1 // pred_check_branch
      %27 = sbr.rel (%p25) target = $region25
    $region24: #{tpu_custom_call.1} parent=1 // pred_region
      %28 = vst [vmem:[#allocation2] sm:$0xff] 0.0
      %29 = vst [vmem:[#allocation2 + $0x8] sm:$0xff] 0.0
    $region25: #{tpu_custom_call.1} parent=1 // pred_fallthru
      _
    %s30 = sadd.s32 0, 0
    %s31 = sld [smem:[#allocation4 + %s30]]
    %p32 = scmp.ne.s32.totalorder %s31, 0
    // Predicated region
    $region26: #{tpu_custom_call.1} parent=1 // pred_check
      %p33 = pneg %p32
    $region27: #{tpu_custom_call.1} parent=1 // pred_check_branch
      %35 = sbr.rel (%p33) target = $region29
    $region28: #{tpu_custom_call.1} parent=1 // pred_region
      %v36 = vld [vmem:[%s4] sm:$0xff]
      %v37 = vld [vmem:[%s4 + $0x8] sm:$0xff]
      %v38 = vld [vmem:[%s5] sm:$0x3]
      %v39 = vld [vmem:[%s1] sm:$0xf]
      %v40 = vld [vmem:[%s1 + $0x4] sm:$0xf]
      %v41 = vld [vmem:[%s2] sm:$0xf]
      %v42 = vld [vmem:[%s2 + $0x4] sm:$0xf]
      %v43 = vld [vmem:[%s2 + $0x8] sm:$0xf]
      %v44 = vld [vmem:[%s2 + $0xc] sm:$0xf]
      %v47 = vunpack.c.l.b16 %v39
      %v48 = vunpack.c.l.b16 %v40
      %v49 = vpack.c.b16 %v48, %v47
      %v54 = vunpack.c.l.b16 %v41
      %v55 = vunpack.c.l.b16 %v42
      %v56 = vunpack.c.l.b16 %v43
      %v57 = vunpack.c.l.b16 %v44
      %v58 = vpack.c.b16 %v55, %v54
      %v59 = vpack.c.b16 %v57, %v56
      %vm62 = vcmask 261120
      %v64 = vsel %vm62, %v49, 0
      %66 = vmatprep.subr.bf16.mxu0 0
      %67 = vmatpush1.bf16.msra.mxu0 %v58
      %68 = vmatprep.subr.bf16.mxu0 0
      %69 = vmatpush1.bf16.msra.mxu0 %v59
      %70 = vmatprep.subr.bf16.mxu0 0
      %71 = vmatpush1.bf16.msra.mxu0 0
      %72 = vmatprep.subr.bf16.mxu0 0
      %73 = vmatpush1.bf16.msra.mxu0 0
      %74 = vmatprep.subr.bf16.mxu0 0
      %75 = vmatpush1.bf16.msra.mxu0 0
      %76 = vmatprep.subr.bf16.mxu0 0
      %77 = vmatpush1.bf16.msra.mxu0 0
      %78 = vmatprep.subr.bf16.mxu0 0
      %79 = vmatpush1.bf16.msra.mxu0 0
      %80 = vmatprep.subr.bf16.mxu0 0
      %81 = vmatpush1.bf16.msra.mxu0 0
      %82 = vmatprep.subr.bf16.mxu0 0
      %83 = vmatpush1.bf16.msra.mxu0 0
      %84 = vmatprep.subr.bf16.mxu0 0
      %85 = vmatpush1.bf16.msra.mxu0 0
      %86 = vmatprep.subr.bf16.mxu0 0
      %87 = vmatpush1.bf16.msra.mxu0 0
      %88 = vmatprep.subr.bf16.mxu0 0
      %89 = vmatpush1.bf16.msra.mxu0 0
      %90 = vmatprep.subr.bf16.mxu0 0
      %91 = vmatpush1.bf16.msra.mxu0 0
      %92 = vmatprep.subr.bf16.mxu0 0
      %93 = vmatpush1.bf16.msra.mxu0 0
      %94 = vmatprep.subr.bf16.mxu0 0
      %95 = vmatpush1.bf16.msra.mxu0 0
      %96 = vmatprep.subr.bf16.mxu0 0
      %97 = vmatpush1.bf16.msra.mxu0 0
      %98 = vmatprep.mubr.bf16.mxu0 0
      %99 = vmatmul.mubr.bf16.gmra.mrb[0].mxu0 %v64
      %v100 = vpop.f32.mrb[0].mxu0
      %v101 = vadd.f32 0.0, %v100
      %v102 = vpop.f32.mrb[0].mxu0
      %v103 = vpop.f32.mrb[0].mxu0
      %v104 = vadd.f32 0.0, %v103
      %v105 = vpop.f32.mrb[0].mxu0
      %106 = vdwg.mxu0
      %v107 = vmul.f32 %v101, 1.442695
      %v108 = vpow.pop %v107
      %v109 = vmul.f32 %v104, 1.442695
      %v110 = vpow.pop %v109
      %111 = vset.pattern.permute.xlu0 0
      %112 = vperm.xlu0 %111, %v36
      %v113 = vpop.permute.xlu0 %112
      %114 = vset.pattern.permute.xlu0 0
      %115 = vperm.xlu0 %114, %v37
      %v116 = vpop.permute.xlu0 %115
      %v117 = vlaneseq
      %v118 = vshrl.u32 %v117, 7
      %v119 = vsub.s32 0, %v118
      %v120 = vrot.slane %v38, %v119
      %vm121 = vcmp.eq.s32.totalorder %v113, %v120
      %vm122 = vcmp.eq.s32.totalorder %v116, %v120
      %123 = vset.pattern.permute.xlu0 1
      %124 = vperm.xlu0 %123, %v36
      %v125 = vpop.permute.xlu0 %124
      %126 = vset.pattern.permute.xlu0 1
      %127 = vperm.xlu0 %126, %v37
      %v128 = vpop.permute.xlu0 %127
      %v129 = vlaneseq
      %v130 = vshrl.u32 %v129, 7
      %v131 = vsub.s32 1, %v130
      %v132 = vrot.slane %v38, %v131
      %vm133 = vcmp.eq.s32.totalorder %v125, %v132
      %vm134 = vcmp.eq.s32.totalorder %v128, %v132
      %v135 = vsel %vm121, %v108, 0.0
      %v136 = vsel %vm122, %v110, 0.0
      %v137 = vsel %vm133, %v108, 0.0
      %v138 = vsel %vm134, %v110, 0.0
      %v139 = vsub.f32 %v135, %v137
      %v140 = vsub.f32 %v136, %v138
      %v141 = vld [vmem:[#allocation2] sm:$0xff]
      %v142 = vld [vmem:[#allocation2 + $0x8] sm:$0xff]
      %v143 = vadd.f32 %v141, %v139
      %v144 = vadd.f32 %v142, %v140
      %145 = vst [vmem:[#allocation2] sm:$0xff] %v143
      %146 = vst [vmem:[#allocation2 + $0x8] sm:$0xff] %v144
    $region29: #{tpu_custom_call.1} parent=1 // pred_fallthru
      _
    // Predicated region
    $region30: #{tpu_custom_call.1} parent=1 // pred_check
      %p147 = pneg %p24
    $region31: #{tpu_custom_call.1} parent=1 // pred_check_branch
      %149 = sbr.rel (%p147) target = $region33
    $region32: #{tpu_custom_call.1} parent=1 // pred_region
      %v150 = vld [vmem:[%s4] sm:$0xff]
      %v151 = vld [vmem:[%s4 + $0x8] sm:$0xff]
      %v152 = vld [vmem:[%s3] sm:$0xff]
      %v153 = vld [vmem:[%s3 + $0x8] sm:$0xff]
      %v154 = vld [vmem:[#allocation2] sm:$0xff]
      %v155 = vld [vmem:[#allocation2 + $0x8] sm:$0xff]
      %156 = vadd.xlane.f32.xlu0 %v154
      %v157 = vpop.xlane.xlu0 %156
      %158 = vadd.xlane.f32.xlu0 %v155
      %v159 = vpop.xlane.xlu0 %158
      %vm160 = vcmp.le.f32.partialorder %v157, 1e-05
      %vm161 = vcmp.le.f32.partialorder %v159, 1e-05
      %v162 = vsel %vm160, 0.0, %v157
      %v163 = vsel %vm161, 0.0, %v159
      %vm164 = vcmp.ne.s32.totalorder %v150, 0
      %vm165 = vcmp.ne.s32.totalorder %v151, 0
      %v166 = vsel %vm164, 0.0, %v162
      %v167 = vsel %vm165, 0.0, %v163
      %v168 = vmul.f32 %v152, 1.442695
      %v169 = vpow.pop %v168
      %v170 = vmul.f32 %v153, 1.442695
      %v171 = vpow.pop %v170
      %174 = vrot.lane.b32.xlu0 %v166, 126
      %v175 = vpop.permute.xlu0 %174
      %176 = vrot.lane.b32.xlu0 %v167, 126
      %v177 = vpop.permute.xlu0 %176
      %v180 = vadd.f32 %v169, %v175
      %v181 = vadd.f32 %v171, %v177
      %v182 = vadd.f32 %v180, 1e-05
      %v183 = vadd.f32 %v181, 1e-05
      %v184 = vlog2.pop %v182
      %v185 = vmul.f32 %v184, 0.6931472
      %v186 = vlog2.pop %v183
      %v187 = vmul.f32 %v186, 0.6931472
      %v188 = vsub.f32 %v152, %v185
      %v189 = vsub.f32 %v153, %v187
      %192 = vrot.lane.b32.xlu0 %v188, 3
      %v193 = vpop.permute.xlu0 %192
      %194 = vrot.lane.b32.xlu0 %v189, 3
      %v195 = vpop.permute.xlu0 %194
      %v198 = vsel %vm164, %v193, 0.0
      %v199 = vsel %vm165, %v195, 0.0
      %vm200 = vcmask 31768
      %v201 = vsel %vm200, %v198, 0.0
      %v202 = vsel %vm200, %v199, 0.0
      %v203 = vadd.f32 %v201, %v202
      %v204 = vrot.slane %v203, 4
      %v205 = vadd.f32 %v203, %v204
      %v206 = vrot.slane %v205, 2
      %v207 = vadd.f32 %v205, %v206
      %v208 = vrot.slane %v207, 1
      %v209 = vadd.f32 %v207, %v208
      %211 = vset.pattern.permute.xlu0 3
      %212 = vperm.xlu0 %211, %v209
      %v213 = vpop.permute.xlu0 %212
      %215 = vst [vmem:[#allocation5] sm:$0xff] %v213
    $region33: #{tpu_custom_call.1} parent=1 // pred_fallthru
      _
    // Predicated region
    $region34: #{tpu_custom_call.1} parent=1 // pred_check
      _
    $region35: #{tpu_custom_call.1} parent=1 // pred_check_branch
      %217 = sbr.rel (0) target = $region37
    $region36: #{tpu_custom_call.1} parent=1 // pred_region
      %s219 = ssub.s32 128, 128
      %220 = vsyncadd [#allocation6], %s219
      %s222 = sshll.u32 [#allocation5], 4
      %s223 = int_to_ptr.vmem [resolvable:$true] %s222
      %225 = dma.vmem_to_hbm [thread:$0]  %s223, 128, %s6, [#allocation6]
    $region37: #{tpu_custom_call.1} parent=1 // pred_fallthru
      _
    // Predicated region
    $region38: #{tpu_custom_call.1} parent=1 // pred_check
      _
    $region39: #{tpu_custom_call.1} parent=1 // pred_check_branch
      %227 = sbr.rel (0) target = $region41
    $region40: #{tpu_custom_call.1} parent=1 // pred_region
      %228 = dma.done [#allocation6], 128
    $region41: #{tpu_custom_call.1} parent=1 // pred_fallthru
      _
    %229 = vsyncpa [#allocation6], 1

</llo_original>
